<compile_context>
chip_gen: v7x
topology: tpu7x:2x2x1
jax: 0.10.0
libtpu: 0.0.40
codegen_flags: <defaults>
</compile_context>

<pallas_src>
import functools

import jax
import jax.numpy as jnp
from jax.experimental import pallas as pl
from jax.experimental.pallas import tpu as pltpu


def cbow_kernel(q_ref, img_ref, w_q_ref, w_img_ref, b_ref, out_ref):
    # Activations arrive in f32; cast to bf16 on the VPU right before each dot
    # (hides under DMA/MXU slack, avoids a separate wrapper-side HBM cast pass).
    q = q_ref[...].astype(w_q_ref.dtype)
    img = img_ref[...].astype(w_img_ref.dtype)
    # Fused question path: (TB, vocab) @ (vocab, out), f32 accumulate on the MXU.
    acc = jnp.dot(q, w_q_ref[...], preferred_element_type=jnp.float32)
    # Image path: (TB, img_dim) @ (img_dim, out).
    acc = acc + jnp.dot(img, w_img_ref[...], preferred_element_type=jnp.float32)
    # Single folded-bias add in f32, then one cast at the store.
    out_ref[...] = (acc + b_ref[...]).astype(out_ref.dtype)


def prepare_params(params, compute_dtype=jnp.bfloat16):
    """One-time parameter prep (run OUTSIDE the per-call hot path).

    `params` uses PyTorch nn.Linear convention: w_* of shape (out, in), b_* of shape (out,).
    Returns:
      w_q    = (W_emb^T @ W_eout^T)            (vocab, out_dim), computed in f32, cast bf16
      w_img  = W_img^T                          (img_dim, out_dim), bf16
      b_total= b_emb @ W_eout^T + b_eout + b_img  (1, out_dim), f32
    which is algebraically identical to the chained Linears of the PyTorch module.
    """
    w_emb = params["w_emb"].astype(jnp.float32)    # (emb_dim, vocab)
    w_eout = params["w_eout"].astype(jnp.float32)  # (out_dim, emb_dim)
    w_img = params["w_img"].astype(jnp.float32)    # (out_dim, img_dim)

    w_q = (w_emb.T @ w_eout.T).astype(compute_dtype)        # (vocab, out_dim)
    w_img_t = w_img.T.astype(compute_dtype)                  # (img_dim, out_dim)
    b_total = (params["b_emb"] @ w_eout.T + params["b_eout"]
               + params["b_img"]).reshape(1, -1).astype(jnp.float32)
    return dict(w_q=w_q, w_img=w_img_t, b_total=b_total)


def _round_up(x, m):
    return (x + m - 1) // m * m


def _choose_tiling(batch, block_b):
    """Pick (rows_per_tile, padded_batch).

    Large batches: tiles are multiples of 256 rows (capped at block_b) and the number of
    grid steps is kept even so v7x's two TensorCores get balanced halves of the "parallel"
    batch axis. Tiny batches: one tile, rows rounded to 16 (bf16 native sublane packing).
    """
    if batch < 512:
        tb = _round_up(batch, 16)
        return tb, tb
    tb = max(256, (min(block_b, _round_up(batch // 2, 256)) // 256) * 256)
    steps = -(-batch // tb)
    steps += steps % 2  # even grid -> balanced across 2 TCs on v7x
    return tb, steps * tb


@functools.partial(jax.jit, static_argnames=("block_b", "out_dtype"))
def cbow_forward(question_input, image_input, prepared, *,
                 block_b=1024, out_dtype=jnp.bfloat16):
    B, vocab = question_input.shape
    img_dim = image_input.shape[1]
    w_q = prepared["w_q"]            # (vocab, out_dim) bf16
    w_img = prepared["w_img"]        # (img_dim, out_dim) bf16
    b_total = prepared["b_total"]    # (1, out_dim) f32
    out_dim = w_q.shape[1]

    tb, b_pad = _choose_tiling(B, block_b)

    # Keep activations in f32 (cast happens inside the kernel); pad batch only if needed.
    q = question_input.astype(jnp.float32)
    img = image_input.astype(jnp.float32)
    if b_pad != B:
        q = jnp.pad(q, ((0, b_pad - B), (0, 0)))
        img = jnp.pad(img, ((0, b_pad - B), (0, 0)))

    grid = (b_pad // tb,)
    resident = lambda shape: pl.BlockSpec(shape, lambda i: (0, 0))  # VMEM-resident across steps

    out_bytes = b_pad * out_dim * jnp.dtype(out_dtype).itemsize
    cost = pl.CostEstimate(
        flops=2 * b_pad * (vocab + img_dim) * out_dim,
        transcendentals=0,
        bytes_accessed=(q.size * 4 + img.size * 4 + w_q.size * 2 + w_img.size * 2
                        + b_total.size * 4 + out_bytes),
    )

    out = pl.pallas_call(
        cbow_kernel,
        out_shape=jax.ShapeDtypeStruct((b_pad, out_dim), out_dtype),
        grid=grid,
        in_specs=[
            pl.BlockSpec((tb, vocab), lambda i: (i, 0)),     # question tile (streamed, f32)
            pl.BlockSpec((tb, img_dim), lambda i: (i, 0)),   # image tile (streamed, f32)
            resident(w_q.shape),
            resident(w_img.shape),
            resident(b_total.shape),
        ],
        out_specs=pl.BlockSpec((tb, out_dim), lambda i: (i, 0)),
        compiler_params=pltpu.CompilerParams(dimension_semantics=("parallel",)),
        cost_estimate=cost,
    )(q, img, w_q, w_img, b_total)

    return out[:B] if b_pad != B else out


def reference_forward(question_input, image_input, params):
    embeds = question_input @ params["w_emb"].T + params["b_emb"]
    emb_out = embeds @ params["w_eout"].T + params["b_eout"]
    img_out = image_input @ params["w_img"].T + params["b_img"]
    return emb_out + img_out


if __name__ == "__main__":
    # Shapes consistent with the module's constructor; batch chosen so the tiler picks
    # two 256-row grid steps (even grid -> exercises the v7x 2-TC split path).
    vocab_size = 256
    embedding_dim = 128
    image_features_dim = 128
    output_dim = 128
    batch = 512

    key = jax.random.PRNGKey(0)
    ks = jax.random.split(key, 8)

    def linear_init(kw, kb, out_f, in_f):
        # Deterministic init mimicking nn.Linear default: U(-1/sqrt(in), 1/sqrt(in)).
        bound = 1.0 / (in_f ** 0.5)
        w = jax.random.uniform(kw, (out_f, in_f), jnp.float32, -bound, bound)
        b = jax.random.uniform(kb, (out_f,), jnp.float32, -bound, bound)
        return w, b

    w_emb, b_emb = linear_init(ks[0], ks[1], embedding_dim, vocab_size)
    w_eout, b_eout = linear_init(ks[2], ks[3], output_dim, embedding_dim)
    w_img, b_img = linear_init(ks[4], ks[5], output_dim, image_features_dim)
    params = dict(w_emb=w_emb, b_emb=b_emb,
                  w_eout=w_eout, b_eout=b_eout,
                  w_img=w_img, b_img=b_img)

    question_input = jax.random.normal(ks[6], (batch, vocab_size), jnp.float32)
    image_input = jax.random.normal(ks[7], (batch, image_features_dim), jnp.float32)

    # One-time prep (matmul/bias fold + bf16 cast) -- outside the per-call path.
    prepared = prepare_params(params)

    out = cbow_forward(question_input, image_input, prepared)
    out = jax.block_until_ready(out)

    ref = reference_forward(question_input, image_input, params)
    assert out.shape == (batch, output_dim)
    # Tolerance accounts for bf16 weights, in-kernel bf16 activation cast and bf16 output
    # (all accumulation is f32 on the MXU).
    max_err = float(jnp.max(jnp.abs(out.astype(jnp.float32) - ref)))
    assert jnp.allclose(out.astype(jnp.float32), ref, atol=4e-2, rtol=4e-2), \
        f"max abs err = {max_err}"

    print("KERNEL_OK")
</pallas_src>

<mosaic_0001>
module attributes {stable_mosaic.version = 11 : i64} {
  func.func @cbow_kernel(%arg0: i32, %arg1: memref<256x256xf32, #tpu.memory_space<vmem>>, %arg2: memref<256x128xf32, #tpu.memory_space<vmem>>, %arg3: memref<256x128xbf16, #tpu.memory_space<vmem>>, %arg4: memref<128x128xbf16, #tpu.memory_space<vmem>>, %arg5: memref<1x128xf32, #tpu.memory_space<vmem>>, %arg6: memref<256x128xbf16, #tpu.memory_space<vmem>>) attributes {dimension_semantics = [#tpu.dimension_semantics<parallel>], iteration_bounds = array<i64: 2>, scalar_prefetch = 0 : i64, scratch_operands = 0 : i64, tpu.core_type = #tpu.core_type<tc>, window_params = [{transform_indices = @transform_0, window_bounds = array<i64: 256, 256>}, {transform_indices = @transform_1, window_bounds = array<i64: 256, 128>}, {pipeline_mode = #tpu.pipeline_mode<synchronous>, transform_indices = @transform_2, window_bounds = array<i64: 256, 128>}, {pipeline_mode = #tpu.pipeline_mode<synchronous>, transform_indices = @transform_3, window_bounds = array<i64: 128, 128>}, {pipeline_mode = #tpu.pipeline_mode<synchronous>, transform_indices = @transform_4, window_bounds = array<i64: 1, 128>}, {transform_indices = @transform_5, window_bounds = array<i64: 256, 128>}]} {
    %c0 = arith.constant 0 : index
    %c0_0 = arith.constant 0 : index
    %0 = vector.load %arg1[%c0, %c0_0] : memref<256x256xf32, #tpu.memory_space<vmem>>, vector<256x256xf32>
    %1 = arith.truncf %0 : vector<256x256xf32> to vector<256x256xbf16>
    %c0_1 = arith.constant 0 : index
    %c0_2 = arith.constant 0 : index
    %2 = vector.load %arg2[%c0_1, %c0_2] : memref<256x128xf32, #tpu.memory_space<vmem>>, vector<256x128xf32>
    %3 = arith.truncf %2 : vector<256x128xf32> to vector<256x128xbf16>
    %c0_3 = arith.constant 0 : index
    %c0_4 = arith.constant 0 : index
    %4 = vector.load %arg3[%c0_3, %c0_4] : memref<256x128xbf16, #tpu.memory_space<vmem>>, vector<256x128xbf16>
    %cst = arith.constant dense<0.000000e+00> : vector<256x128xf32>
    %5 = tpu.matmul %1, %4, %cst {dimension_numbers = #tpu.dot_dimension_numbers<[1], [0], [0], [1], [0, 0, 1, 1], [], []>} : vector<256x256xbf16>, vector<256x128xbf16>, vector<256x128xf32> -> vector<256x128xf32>
    %c0_5 = arith.constant 0 : index
    %c0_6 = arith.constant 0 : index
    %6 = vector.load %arg4[%c0_5, %c0_6] : memref<128x128xbf16, #tpu.memory_space<vmem>>, vector<128x128xbf16>
    %cst_7 = arith.constant dense<0.000000e+00> : vector<256x128xf32>
    %7 = tpu.matmul %3, %6, %cst_7 {dimension_numbers = #tpu.dot_dimension_numbers<[1], [0], [0], [1], [0, 0, 1, 1], [], []>} : vector<256x128xbf16>, vector<128x128xbf16>, vector<256x128xf32> -> vector<256x128xf32>
    %8 = arith.addf %5, %7 : vector<256x128xf32>
    %c0_8 = arith.constant 0 : index
    %c0_9 = arith.constant 0 : index
    %9 = vector.load %arg5[%c0_8, %c0_9] : memref<1x128xf32, #tpu.memory_space<vmem>>, vector<1x128xf32>
    %10 = vector.broadcast %9 : vector<1x128xf32> to vector<256x128xf32>
    %11 = arith.addf %8, %10 : vector<256x128xf32>
    %12 = arith.truncf %11 : vector<256x128xf32> to vector<256x128xbf16>
    %c0_10 = arith.constant 0 : index
    %c0_11 = arith.constant 0 : index
    %13 = vector.load %arg6[%c0_10, %c0_11] : memref<256x128xbf16, #tpu.memory_space<vmem>>, vector<256x128xbf16>
    tpu.vector_store %arg6[%c0_10, %c0_11], %12 {strides = array<i32>} : memref<256x128xbf16, #tpu.memory_space<vmem>>, vector<256x128xbf16>,
    return
  }
  func.func @transform_0(%arg0: i32) -> (i32, i32) {
    %c0_i32 = arith.constant 0 : i32
    %c0_i32_0 = arith.constant 0 : i32
    return %arg0, %c0_i32 : i32, i32
  }
  func.func @transform_1(%arg0: i32) -> (i32, i32) {
    %c0_i32 = arith.constant 0 : i32
    %c0_i32_0 = arith.constant 0 : i32
    return %arg0, %c0_i32 : i32, i32
  }
  func.func @transform_2(%arg0: i32) -> (i32, i32) {
    %c0_i32 = arith.constant 0 : i32
    %c0_i32_0 = arith.constant 0 : i32
    %c0_i32_1 = arith.constant 0 : i32
    return %c0_i32, %c0_i32_0 : i32, i32
  }
  func.func @transform_3(%arg0: i32) -> (i32, i32) {
    %c0_i32 = arith.constant 0 : i32
    %c0_i32_0 = arith.constant 0 : i32
    %c0_i32_1 = arith.constant 0 : i32
    return %c0_i32, %c0_i32_0 : i32, i32
  }
  func.func @transform_4(%arg0: i32) -> (i32, i32) {
    %c0_i32 = arith.constant 0 : i32
    %c0_i32_0 = arith.constant 0 : i32
    %c0_i32_1 = arith.constant 0 : i32
    return %c0_i32, %c0_i32_0 : i32, i32
  }
  func.func @transform_5(%arg0: i32) -> (i32, i32) {
    %c0_i32 = arith.constant 0 : i32
    %c0_i32_0 = arith.constant 0 : i32
    return %arg0, %c0_i32 : i32, i32
  }
}

</mosaic_0001>

<llo_original>
// kernel: cbow_forward.1
$region0: #{cbow_forward.1}
  #allocation0 [shape = 'u32[]', space=smem, size = 0x4, offset = 0x4, fixed_abs, tag = 'smem constant byte address 0x4 - core index']
  #allocation1 [shape = 'u32[144,128]{1,0:T(1,128)}', space=vmem, size = 0x12000, scoped, tag = 'internal scratch']
  %s0 = inlined_call_operand.hbm [shape: f32[512,256], index: 0, kind: input, shape index: {}]
  %s1 = inlined_call_operand.hbm [shape: f32[512,128], index: 1, kind: input, shape index: {}]
  %s2 = inlined_call_operand.hbm [shape: bf16[256,128], index: 2, kind: input, shape index: {}]
  %s3 = inlined_call_operand.hbm [shape: bf16[128,128], index: 3, kind: input, shape index: {}]
  %s4 = inlined_call_operand.vmem [shape: f32[1,128], index: 4, kind: input, shape index: {}]
  %s5 = inlined_call_operand.hbm [shape: bf16[512,128], index: 5, kind: output, shape index: {}]
  %s6 = sld [smem:[#allocation0]]
  $region69: #{cbow_forward.1} parent=0
    _
  %s8 = ssub.s32 1, %s6
  %s9 = scalar_select 0, %s8, %s6
  $region1: #{cbow_forward.1} parent=0
    #allocation2 [shape = 'u8[524288]{0}', space=vmem, size = 0x80000, scoped, tag = 'input window, operand 0']
    #allocation3 [shape = 's32[2]{0}', space=sflag, size = 0x8, scoped, tag = 'scoped memory for cbow_forward.1']
    #allocation4 [shape = 's32[2]{0}', space=sflag, size = 0x8, scoped, tag = 'scoped memory for cbow_forward.1']
    #allocation5 [shape = 'u8[262144]{0}', space=vmem, size = 0x40000, scoped, tag = 'input window, operand 1']
    #allocation6 [shape = 's32[2]{0}', space=sflag, size = 0x8, scoped, tag = 'scoped memory for cbow_forward.1']
    #allocation7 [shape = 'u8[65536]{0}', space=vmem, size = 0x10000, scoped, tag = 'input window, operand 2, single buffered']
    #allocation8 [shape = 'u8[32768]{0}', space=vmem, size = 0x8000, scoped, tag = 'input window, operand 3, single buffered']
    #allocation9 [shape = 's32[1]{0}', space=sflag, size = 0x4, scoped, tag = 'scoped memory for cbow_forward.1']
    #allocation10 [shape = 'u8[131072]{0}', space=vmem, size = 0x20000, scoped, tag = 'output window, operand 0']
    %10 = vsyncpa [#allocation3], 0
    %s11 = scalar_lea.sflag [#allocation3], 1
    %12 = vsyncpa %s11, 0
    %13 = vsyncpa [#allocation6], 0
    %s14 = scalar_lea.sflag [#allocation6], 1
    %15 = vsyncpa %s14, 0
    %16 = vsyncpa [#allocation9], 0
    %17 = vsyncpa [#allocation4], 0
    %s18 = scalar_lea.sflag [#allocation4], 1
    %19 = vsyncpa %s18, 0
    loop: start=0, step=1, limit=4
    $region2: #{cbow_forward.1} parent=1 // loop_pre_header
      _
    $region3: #{cbow_forward.1} parent=1 // loop_header
      %s21 = sphi 0, %s25
      %p22 = scmp.ge.s32.totalorder %s21, 4
      %s31 = sphi 0, %s33
      %s34 = sphi 0, %s31
      %s35 = sphi 0, %s34
      %s51 = sphi 0, %s35
      %s57 = sphi 0, %s59
      %s60 = sphi 0, %s57
      %s61 = sphi 0, %s60
      %s77 = sphi 0, %s61
      %s81 = sphi 0, %s81
      %s83 = sphi 0, %s81
      %s84 = sphi 0, %s83
      %s98 = sphi 0, %s84
      %s102 = sphi 0, %s102
      %s104 = sphi 0, %s102
      %s105 = sphi 0, %s104
      %s119 = sphi 0, %s105
      %s123 = sphi 0, %s123
      %s125 = sphi 0, %s123
      %s126 = sphi 0, %s125
      %s140 = sphi 0, %s126
      %s146 = sphi 0, %s148
      %s149 = sphi 0, %s146
      %s150 = sphi 0, %s149
      %s166 = sphi 0, %s150
    $region4: #{cbow_forward.1} parent=1 // loop_header_branch
      %24 = sbr.rel (%p22) target = $region8
    $region5: #{cbow_forward.1} parent=1 // loop_body
      %s26 = ssub.s32 %s21, 1
      %s27 = ssub.s32 %s21, 2
      %s28 = sadd.s32 %s21, 1
      %s29 = ssub.s32 %s21, %s28
      %p30 = scmp.eq.s32.totalorder %s29, 0
      %s32 = sadd.s32 %s31, 1
      %s33 = scalar_select %p30, %s31, %s32
      %p36 = pneg %p30
      %p37 = scmp.eq.s32.totalorder %s21, 1
      %p38 = por %p36, %p37
      %p39 = scmp.ne.s32.totalorder %s31, %s34
      %p40 = scmp.eq.s32.totalorder %s21, 0
      %p41 = por %p39, %p40
      %p42 = scmp.ne.s32.totalorder %s31, %s34
      %p43 = scmp.eq.s32.totalorder %s26, 1
      %p44 = por %p42, %p43
      %p45 = scmp.ne.s32.totalorder %s34, %s35
      %p46 = scmp.eq.s32.totalorder %s26, 0
      %p47 = por %p45, %p46
      %p48 = scmp.ne.s32.totalorder %s34, %s35
      %p49 = scmp.eq.s32.totalorder %s27, 1
      %p50 = por %p48, %p49
      %p52 = scmp.ne.s32.totalorder %s35, %s51
      %p53 = scmp.eq.s32.totalorder %s27, 0
      %p54 = por %p52, %p53
      %s55 = ssub.s32 %s21, %s28
      %p56 = scmp.eq.s32.totalorder %s55, 0
      %s58 = sadd.s32 %s57, 1
      %s59 = scalar_select %p56, %s57, %s58
      %p62 = pneg %p56
      %p63 = scmp.eq.s32.totalorder %s21, 1
      %p64 = por %p62, %p63
      %p65 = scmp.ne.s32.totalorder %s57, %s60
      %p66 = scmp.eq.s32.totalorder %s21, 0
      %p67 = por %p65, %p66
      %p68 = scmp.ne.s32.totalorder %s57, %s60
      %p69 = scmp.eq.s32.totalorder %s26, 1
      %p70 = por %p68, %p69
      %p71 = scmp.ne.s32.totalorder %s60, %s61
      %p72 = scmp.eq.s32.totalorder %s26, 0
      %p73 = por %p71, %p72
      %p74 = scmp.ne.s32.totalorder %s60, %s61
      %p75 = scmp.eq.s32.totalorder %s27, 1
      %p76 = por %p74, %p75
      %p78 = scmp.ne.s32.totalorder %s61, %s77
      %p79 = scmp.eq.s32.totalorder %s27, 0
      %p80 = por %p78, %p79
      %s82 = sadd.s32 %s81, 1
      %p85 = scmp.eq.s32.totalorder %s21, 1
      %p86 = scmp.ne.s32.totalorder %s81, %s83
      %p87 = scmp.eq.s32.totalorder %s21, 0
      %p88 = por %p86, %p87
      %p89 = scmp.ne.s32.totalorder %s81, %s83
      %p90 = scmp.eq.s32.totalorder %s26, 1
      %p91 = por %p89, %p90
      %p92 = scmp.ne.s32.totalorder %s83, %s84
      %p93 = scmp.eq.s32.totalorder %s26, 0
      %p94 = por %p92, %p93
      %p95 = scmp.ne.s32.totalorder %s83, %s84
      %p96 = scmp.eq.s32.totalorder %s27, 1
      %p97 = por %p95, %p96
      %p99 = scmp.ne.s32.totalorder %s84, %s98
      %p100 = scmp.eq.s32.totalorder %s27, 0
      %p101 = por %p99, %p100
      %s103 = sadd.s32 %s102, 1
      %p106 = scmp.eq.s32.totalorder %s21, 1
      %p107 = scmp.ne.s32.totalorder %s102, %s104
      %p108 = scmp.eq.s32.totalorder %s21, 0
      %p109 = por %p107, %p108
      %p110 = scmp.ne.s32.totalorder %s102, %s104
      %p111 = scmp.eq.s32.totalorder %s26, 1
      %p112 = por %p110, %p111
      %p113 = scmp.ne.s32.totalorder %s104, %s105
      %p114 = scmp.eq.s32.totalorder %s26, 0
      %p115 = por %p113, %p114
      %p116 = scmp.ne.s32.totalorder %s104, %s105
      %p117 = scmp.eq.s32.totalorder %s27, 1
      %p118 = por %p116, %p117
      %p120 = scmp.ne.s32.totalorder %s105, %s119
      %p121 = scmp.eq.s32.totalorder %s27, 0
      %p122 = por %p120, %p121
      %s124 = sadd.s32 %s123, 1
      %p127 = scmp.eq.s32.totalorder %s21, 1
      %p128 = scmp.ne.s32.totalorder %s123, %s125
      %p129 = scmp.eq.s32.totalorder %s21, 0
      %p130 = por %p128, %p129
      %p131 = scmp.ne.s32.totalorder %s123, %s125
      %p132 = scmp.eq.s32.totalorder %s26, 1
      %p133 = por %p131, %p132
      %p134 = scmp.ne.s32.totalorder %s125, %s126
      %p135 = scmp.eq.s32.totalorder %s26, 0
      %p136 = por %p134, %p135
      %p137 = scmp.ne.s32.totalorder %s125, %s126
      %p138 = scmp.eq.s32.totalorder %s27, 1
      %p139 = por %p137, %p138
      %p141 = scmp.ne.s32.totalorder %s126, %s140
      %p142 = scmp.eq.s32.totalorder %s27, 0
      %p143 = por %p141, %p142
      %s144 = ssub.s32 %s21, %s28
      %p145 = scmp.eq.s32.totalorder %s144, 0
      %s147 = sadd.s32 %s146, 1
      %s148 = scalar_select %p145, %s146, %s147
      %p151 = pneg %p145
      %p152 = scmp.eq.s32.totalorder %s21, 1
      %p153 = por %p151, %p152
      %p154 = scmp.ne.s32.totalorder %s146, %s149
      %p155 = scmp.eq.s32.totalorder %s21, 0
      %p156 = por %p154, %p155
      %p157 = scmp.ne.s32.totalorder %s146, %s149
      %p158 = scmp.eq.s32.totalorder %s26, 1
      %p159 = por %p157, %p158
      %p160 = scmp.ne.s32.totalorder %s149, %s150
      %p161 = scmp.eq.s32.totalorder %s26, 0
      %p162 = por %p160, %p161
      %p163 = scmp.ne.s32.totalorder %s149, %s150
      %p164 = scmp.eq.s32.totalorder %s27, 1
      %p165 = por %p163, %p164
      %p167 = scmp.ne.s32.totalorder %s150, %s166
      %p168 = scmp.eq.s32.totalorder %s27, 0
      %p169 = por %p167, %p168
      %p170 = scmp.le.s32.totalorder 1, %s21
      %p171 = scmp.lt.s32.totalorder %s21, 3
      %p172 = pnand %p170, %p171
      %p173 = pneg %p172
      // Predicated region
      $region9: #{cbow_forward.1} parent=5 // pred_check
        _
      $region10: #{cbow_forward.1} parent=5 // pred_check_branch
        %175 = sbr.rel (%p172) target = $region12
      $region11: #{cbow_forward.1} parent=5 // pred_region
        %s176 = ssub.s32 %s21, 1
        // Predicated region
        $region13: #{cbow_forward.1} parent=11 // pred_check
          %p177 = pneg %p94
        $region14: #{cbow_forward.1} parent=11 // pred_check_branch
          %179 = sbr.rel (%p177) target = $region16
        $region15: #{cbow_forward.1} parent=11 // pred_region
          %s181 = ssub.s32 2048, 2048
          %182 = vsyncadd [#allocation6], %s181
          %s183 = sshll.u32 [#allocation7], 4
          %s184 = int_to_ptr.vmem [resolvable:$true] %s183
          %189 = dma.hbm_to_vmem [thread:$0]  %s2, 2048, %s184, [#allocation6], 64, 64, 4
        $region16: #{cbow_forward.1} parent=11 // pred_fallthru
          _
        // Predicated region
        $region17: #{cbow_forward.1} parent=11 // pred_check
          %p190 = pneg %p115
        $region18: #{cbow_forward.1} parent=11 // pred_check_branch
          %192 = sbr.rel (%p190) target = $region20
        $region19: #{cbow_forward.1} parent=11 // pred_region
          %s194 = ssub.s32 1024, 1024
          %195 = vsyncadd [#allocation9], %s194
          %s196 = sshll.u32 [#allocation8], 4
          %s197 = int_to_ptr.vmem [resolvable:$true] %s196
          %202 = dma.hbm_to_vmem [thread:$0]  %s3, 1024, %s197, [#allocation9], 64, 64, 4
        $region20: #{cbow_forward.1} parent=11 // pred_fallthru
          _
        // Predicated region
        $region21: #{cbow_forward.1} parent=11 // pred_check
          %p203 = pneg %p136
        $region22: #{cbow_forward.1} parent=11 // pred_check_branch
          %205 = sbr.rel (%p203) target = $region24
        $region23: #{cbow_forward.1} parent=11 // pred_region
          _
        $region24: #{cbow_forward.1} parent=11 // pred_fallthru
          _
      $region12: #{cbow_forward.1} parent=5 // pred_fallthru
        _
      %p206 = scmp.lt.s32.totalorder %s21, 2
      // Predicated region
      $region25: #{cbow_forward.1} parent=5 // pred_check
        %p207 = pneg %p206
      $region26: #{cbow_forward.1} parent=5 // pred_check_branch
        %209 = sbr.rel (%p207) target = $region28
      $region27: #{cbow_forward.1} parent=5 // pred_region
        // Predicated region
        $region29: #{cbow_forward.1} parent=27 // pred_check
          %p210 = pneg %p41
        $region30: #{cbow_forward.1} parent=27 // pred_check_branch
          %212 = sbr.rel (%p210) target = $region32
        $region31: #{cbow_forward.1} parent=27 // pred_region
          %s213 = sand.u32 %s31, 1
          %s214 = scalar_lea.sflag [#allocation3], %s213
          %s215 = sand.u32 %s31, 1
          %s216 = smul.addr %s215, 512
          %s217 = scalar_lea.vmem [#allocation2], %s216
          %s218 = smul.u32 32, %s21
          %s220 = ssub.s32 8192, 8192
          %221 = vsyncadd %s214, %s220
          %s222 = smul.addr %s218, 2
          %s223 = smul.addr %s222, 128
          %s224 = scalar_lea.hbm %s0, %s223
          %s225 = sshll.u32 %s217, 4
          %s226 = int_to_ptr.vmem [resolvable:$true] %s225
          %231 = dma.hbm_to_vmem [thread:$0]  %s224, 8192, %s226, %s214, 256, 256, 16
        $region32: #{cbow_forward.1} parent=27 // pred_fallthru
          _
        // Predicated region
        $region33: #{cbow_forward.1} parent=27 // pred_check
          %p232 = pneg %p67
        $region34: #{cbow_forward.1} parent=27 // pred_check_branch
          %234 = sbr.rel (%p232) target = $region36
        $region35: #{cbow_forward.1} parent=27 // pred_region
          %s235 = sand.u32 %s21, 1
          %s236 = scalar_lea.sflag [#allocation6], %s235
          %s237 = sand.u32 %s57, 1
          %s238 = smul.addr %s237, 256
          %s239 = scalar_lea.vmem [#allocation5], %s238
          %s240 = smul.u32 32, %s21
          %s242 = ssub.s32 4096, 4096
          %243 = vsyncadd %s236, %s242
          %s244 = smul.addr %s240, 128
          %s245 = scalar_lea.hbm %s1, %s244
          %s246 = sshll.u32 %s239, 4
          %s247 = int_to_ptr.vmem [resolvable:$true] %s246
          %252 = dma.hbm_to_vmem [thread:$0]  %s245, 4096, %s247, %s236, 128, 128, 8
        $region36: #{cbow_forward.1} parent=27 // pred_fallthru
          _
      $region28: #{cbow_forward.1} parent=5 // pred_fallthru
        _
      %p253 = scmp.le.s32.totalorder 1, %s21
      %p254 = scmp.lt.s32.totalorder %s21, 3
      %p255 = pnand %p253, %p254
      %p256 = pneg %p255
      // Predicated region
      $region37: #{cbow_forward.1} parent=5 // pred_check
        _
      $region38: #{cbow_forward.1} parent=5 // pred_check_branch
        %258 = sbr.rel (%p255) target = $region40
      $region39: #{cbow_forward.1} parent=5 // pred_region
        %s259 = ssub.s32 %s21, 1
        %s260 = sand.u32 %s34, 1
        %s261 = scalar_lea.sflag [#allocation3], %s260
        %s262 = sand.u32 %s34, 1
        %s263 = smul.addr %s262, 512
        %s264 = scalar_lea.vmem [#allocation2], %s263
        // Predicated region
        $region41: #{cbow_forward.1} parent=39 // pred_check
          %p265 = pneg %p47
        $region42: #{cbow_forward.1} parent=39 // pred_check_branch
          %267 = sbr.rel (%p265) target = $region44
        $region43: #{cbow_forward.1} parent=39 // pred_region
          %268 = dma.done %s261, 8192
        $region44: #{cbow_forward.1} parent=39 // pred_fallthru
          _
        %s269 = sand.u32 %s26, 1
        %s270 = scalar_lea.sflag [#allocation6], %s269
        %s271 = sand.u32 %s60, 1
        %s272 = smul.addr %s271, 256
        %s273 = scalar_lea.vmem [#allocation5], %s272
        // Predicated region
        $region45: #{cbow_forward.1} parent=39 // pred_check
          %p274 = pneg %p73
        $region46: #{cbow_forward.1} parent=39 // pred_check_branch
          %276 = sbr.rel (%p274) target = $region48
        $region47: #{cbow_forward.1} parent=39 // pred_region
          %277 = dma.done %s270, 4096
        $region48: #{cbow_forward.1} parent=39 // pred_fallthru
          _
        // Predicated region
        $region49: #{cbow_forward.1} parent=39 // pred_check
          %p278 = pneg %p94
        $region50: #{cbow_forward.1} parent=39 // pred_check_branch
          %280 = sbr.rel (%p278) target = $region52
        $region51: #{cbow_forward.1} parent=39 // pred_region
          %281 = dma.done [#allocation6], 2048
        $region52: #{cbow_forward.1} parent=39 // pred_fallthru
          _
        // Predicated region
        $region53: #{cbow_forward.1} parent=39 // pred_check
          %p282 = pneg %p115
        $region54: #{cbow_forward.1} parent=39 // pred_check_branch
          %284 = sbr.rel (%p282) target = $region56
        $region55: #{cbow_forward.1} parent=39 // pred_region
          %285 = dma.done [#allocation9], 1024
        $region56: #{cbow_forward.1} parent=39 // pred_fallthru
          _
        %s286 = sand.u32 %s34, 1
        %s287 = scalar_lea.sflag [#allocation3], %s286
        %s288 = sand.u32 %s34, 1
        %s289 = smul.addr %s288, 512
        %s290 = scalar_lea.vmem [#allocation2], %s289
        %p291 = pneg %p47
        %p292 = pneg %p44
        %s293 = sand.u32 %s26, 1
        %s294 = scalar_lea.sflag [#allocation6], %s293
        %s295 = sand.u32 %s60, 1
        %s296 = smul.addr %s295, 256
        %s297 = scalar_lea.vmem [#allocation5], %s296
        %p298 = pneg %p73
        %p299 = pneg %p70
        %p300 = pneg %p94
        %p301 = pneg %p91
        %p302 = pneg %p115
        %p303 = pneg %p112
        %p304 = pneg %p136
        %p305 = pneg %p133
        %p306 = pneg %p162
        %p307 = pneg %p159
        %s308 = sand.u32 %s149, 1
        %s309 = scalar_lea.sflag [#allocation4], %s308
        %s310 = sand.u32 %s149, 1
        %s311 = smul.addr %s310, 128
        %s312 = scalar_lea.vmem [#allocation10], %s311
        %s313 = smul.u32 32, %s26
        %s314 = smul.u32 32, %s26
        %s315 = smul.u32 32, %s26
        %v317 = vld [vmem:[%s264] sm:$0xff]
        %v318 = vld [vmem:[%s264 + $0x8] sm:$0xff]
        %v319 = vld [vmem:[%s264 + $0x10] sm:$0xff]
        %v320 = vld [vmem:[%s264 + $0x18] sm:$0xff]
        %v321 = vld [vmem:[%s264 + $0x20] sm:$0xff]
        %v322 = vld [vmem:[%s264 + $0x28] sm:$0xff]
        %v323 = vld [vmem:[%s264 + $0x30] sm:$0xff]
        %v324 = vld [vmem:[%s264 + $0x38] sm:$0xff]
        %v325 = vld [vmem:[%s264 + $0x40] sm:$0xff]
        %v326 = vld [vmem:[%s264 + $0x48] sm:$0xff]
        %v327 = vld [vmem:[%s264 + $0x50] sm:$0xff]
        %v328 = vld [vmem:[%s264 + $0x58] sm:$0xff]
        %v329 = vld [vmem:[%s264 + $0x60] sm:$0xff]
        %v330 = vld [vmem:[%s264 + $0x68] sm:$0xff]
        %v331 = vld [vmem:[%s264 + $0x70] sm:$0xff]
        %v332 = vld [vmem:[%s264 + $0x78] sm:$0xff]
        %v333 = vld [vmem:[%s264 + $0x80] sm:$0xff]
        %v334 = vld [vmem:[%s264 + $0x88] sm:$0xff]
        %v335 = vld [vmem:[%s264 + $0x90] sm:$0xff]
        %v336 = vld [vmem:[%s264 + $0x98] sm:$0xff]
        %v337 = vld [vmem:[%s264 + $0xa0] sm:$0xff]
        %v338 = vld [vmem:[%s264 + $0xa8] sm:$0xff]
        %v339 = vld [vmem:[%s264 + $0xb0] sm:$0xff]
        %v340 = vld [vmem:[%s264 + $0xb8] sm:$0xff]
        %v341 = vld [vmem:[%s264 + $0xc0] sm:$0xff]
        %v342 = vld [vmem:[%s264 + $0xc8] sm:$0xff]
        %v343 = vld [vmem:[%s264 + $0xd0] sm:$0xff]
        %v344 = vld [vmem:[%s264 + $0xd8] sm:$0xff]
        %v345 = vld [vmem:[%s264 + $0xe0] sm:$0xff]
        %v346 = vld [vmem:[%s264 + $0xe8] sm:$0xff]
        %v347 = vld [vmem:[%s264 + $0xf0] sm:$0xff]
        %v348 = vld [vmem:[%s264 + $0xf8] sm:$0xff]
        %v349 = vld [vmem:[%s264 + $0x100] sm:$0xff]
        %v350 = vld [vmem:[%s264 + $0x108] sm:$0xff]
        %v351 = vld [vmem:[%s264 + $0x110] sm:$0xff]
        %v352 = vld [vmem:[%s264 + $0x118] sm:$0xff]
        %v353 = vld [vmem:[%s264 + $0x120] sm:$0xff]
        %v354 = vld [vmem:[%s264 + $0x128] sm:$0xff]
        %v355 = vld [vmem:[%s264 + $0x130] sm:$0xff]
        %v356 = vld [vmem:[%s264 + $0x138] sm:$0xff]
        %v357 = vld [vmem:[%s264 + $0x140] sm:$0xff]
        %v358 = vld [vmem:[%s264 + $0x148] sm:$0xff]
        %v359 = vld [vmem:[%s264 + $0x150] sm:$0xff]
        %v360 = vld [vmem:[%s264 + $0x158] sm:$0xff]
        %v361 = vld [vmem:[%s264 + $0x160] sm:$0xff]
        %v362 = vld [vmem:[%s264 + $0x168] sm:$0xff]
        %v363 = vld [vmem:[%s264 + $0x170] sm:$0xff]
        %v364 = vld [vmem:[%s264 + $0x178] sm:$0xff]
        %v365 = vld [vmem:[%s264 + $0x180] sm:$0xff]
        %v366 = vld [vmem:[%s264 + $0x188] sm:$0xff]
        %v367 = vld [vmem:[%s264 + $0x190] sm:$0xff]
        %v368 = vld [vmem:[%s264 + $0x198] sm:$0xff]
        %v369 = vld [vmem:[%s264 + $0x1a0] sm:$0xff]
        %v370 = vld [vmem:[%s264 + $0x1a8] sm:$0xff]
        %v371 = vld [vmem:[%s264 + $0x1b0] sm:$0xff]
        %v372 = vld [vmem:[%s264 + $0x1b8] sm:$0xff]
        %v373 = vld [vmem:[%s264 + $0x1c0] sm:$0xff]
        %v374 = vld [vmem:[%s264 + $0x1c8] sm:$0xff]
        %v375 = vld [vmem:[%s264 + $0x1d0] sm:$0xff]
        %v376 = vld [vmem:[%s264 + $0x1d8] sm:$0xff]
        %v377 = vld [vmem:[%s264 + $0x1e0] sm:$0xff]
        %v378 = vld [vmem:[%s264 + $0x1e8] sm:$0xff]
        %v379 = vld [vmem:[%s264 + $0x1f0] sm:$0xff]
        %v380 = vld [vmem:[%s264 + $0x1f8] sm:$0xff]
        %v381 = vpack.c.bf16 %v319, %v317
        %v382 = vpack.c.bf16 %v320, %v318
        %v383 = vpack.c.bf16 %v323, %v321
        %v384 = vpack.c.bf16 %v324, %v322
        %v385 = vpack.c.bf16 %v327, %v325
        %v386 = vpack.c.bf16 %v328, %v326
        %v387 = vpack.c.bf16 %v331, %v329
        %v388 = vpack.c.bf16 %v332, %v330
        %v389 = vpack.c.bf16 %v335, %v333
        %v390 = vpack.c.bf16 %v336, %v334
        %v391 = vpack.c.bf16 %v339, %v337
        %v392 = vpack.c.bf16 %v340, %v338
        %v393 = vpack.c.bf16 %v343, %v341
        %v394 = vpack.c.bf16 %v344, %v342
        %v395 = vpack.c.bf16 %v347, %v345
        %v396 = vpack.c.bf16 %v348, %v346
        %v397 = vpack.c.bf16 %v351, %v349
        %v398 = vpack.c.bf16 %v352, %v350
        %v399 = vpack.c.bf16 %v355, %v353
        %v400 = vpack.c.bf16 %v356, %v354
        %v401 = vpack.c.bf16 %v359, %v357
        %v402 = vpack.c.bf16 %v360, %v358
        %v403 = vpack.c.bf16 %v363, %v361
        %v404 = vpack.c.bf16 %v364, %v362
        %v405 = vpack.c.bf16 %v367, %v365
        %v406 = vpack.c.bf16 %v368, %v366
        %v407 = vpack.c.bf16 %v371, %v369
        %v408 = vpack.c.bf16 %v372, %v370
        %v409 = vpack.c.bf16 %v375, %v373
        %v410 = vpack.c.bf16 %v376, %v374
        %v411 = vpack.c.bf16 %v379, %v377
        %v412 = vpack.c.bf16 %v380, %v378
        %v413 = vld [vmem:[%s273] sm:$0xff]
        %v414 = vld [vmem:[%s273 + $0x8] sm:$0xff]
        %v415 = vld [vmem:[%s273 + $0x10] sm:$0xff]
        %v416 = vld [vmem:[%s273 + $0x18] sm:$0xff]
        %v417 = vld [vmem:[%s273 + $0x20] sm:$0xff]
        %v418 = vld [vmem:[%s273 + $0x28] sm:$0xff]
        %v419 = vld [vmem:[%s273 + $0x30] sm:$0xff]
        %v420 = vld [vmem:[%s273 + $0x38] sm:$0xff]
        %v421 = vld [vmem:[%s273 + $0x40] sm:$0xff]
        %v422 = vld [vmem:[%s273 + $0x48] sm:$0xff]
        %v423 = vld [vmem:[%s273 + $0x50] sm:$0xff]
        %v424 = vld [vmem:[%s273 + $0x58] sm:$0xff]
        %v425 = vld [vmem:[%s273 + $0x60] sm:$0xff]
        %v426 = vld [vmem:[%s273 + $0x68] sm:$0xff]
        %v427 = vld [vmem:[%s273 + $0x70] sm:$0xff]
        %v428 = vld [vmem:[%s273 + $0x78] sm:$0xff]
        %v429 = vld [vmem:[%s273 + $0x80] sm:$0xff]
        %v430 = vld [vmem:[%s273 + $0x88] sm:$0xff]
        %v431 = vld [vmem:[%s273 + $0x90] sm:$0xff]
        %v432 = vld [vmem:[%s273 + $0x98] sm:$0xff]
        %v433 = vld [vmem:[%s273 + $0xa0] sm:$0xff]
        %v434 = vld [vmem:[%s273 + $0xa8] sm:$0xff]
        %v435 = vld [vmem:[%s273 + $0xb0] sm:$0xff]
        %v436 = vld [vmem:[%s273 + $0xb8] sm:$0xff]
        %v437 = vld [vmem:[%s273 + $0xc0] sm:$0xff]
        %v438 = vld [vmem:[%s273 + $0xc8] sm:$0xff]
        %v439 = vld [vmem:[%s273 + $0xd0] sm:$0xff]
        %v440 = vld [vmem:[%s273 + $0xd8] sm:$0xff]
        %v441 = vld [vmem:[%s273 + $0xe0] sm:$0xff]
        %v442 = vld [vmem:[%s273 + $0xe8] sm:$0xff]
        %v443 = vld [vmem:[%s273 + $0xf0] sm:$0xff]
        %v444 = vld [vmem:[%s273 + $0xf8] sm:$0xff]
        %v445 = vpack.c.bf16 %v414, %v413
        %v446 = vpack.c.bf16 %v416, %v415
        %v447 = vpack.c.bf16 %v418, %v417
        %v448 = vpack.c.bf16 %v420, %v419
        %v449 = vpack.c.bf16 %v422, %v421
        %v450 = vpack.c.bf16 %v424, %v423
        %v451 = vpack.c.bf16 %v426, %v425
        %v452 = vpack.c.bf16 %v428, %v427
        %v453 = vpack.c.bf16 %v430, %v429
        %v454 = vpack.c.bf16 %v432, %v431
        %v455 = vpack.c.bf16 %v434, %v433
        %v456 = vpack.c.bf16 %v436, %v435
        %v457 = vpack.c.bf16 %v438, %v437
        %v458 = vpack.c.bf16 %v440, %v439
        %v459 = vpack.c.bf16 %v442, %v441
        %v460 = vpack.c.bf16 %v444, %v443
        %v461 = vld [vmem:[#allocation7] sm:$0xf]
        %v462 = vld [vmem:[#allocation7 + $0x4] sm:$0xf]
        %v463 = vld [vmem:[#allocation7 + $0x8] sm:$0xf]
        %v464 = vld [vmem:[#allocation7 + $0xc] sm:$0xf]
        %v465 = vld [vmem:[#allocation7 + $0x10] sm:$0xf]
        %v466 = vld [vmem:[#allocation7 + $0x14] sm:$0xf]
        %v467 = vld [vmem:[#allocation7 + $0x18] sm:$0xf]
        %v468 = vld [vmem:[#allocation7 + $0x1c] sm:$0xf]
        %v469 = vld [vmem:[#allocation7 + $0x20] sm:$0xf]
        %v470 = vld [vmem:[#allocation7 + $0x24] sm:$0xf]
        %v471 = vld [vmem:[#allocation7 + $0x28] sm:$0xf]
        %v472 = vld [vmem:[#allocation7 + $0x2c] sm:$0xf]
        %v473 = vld [vmem:[#allocation7 + $0x30] sm:$0xf]
        %v474 = vld [vmem:[#allocation7 + $0x34] sm:$0xf]
        %v475 = vld [vmem:[#allocation7 + $0x38] sm:$0xf]
        %v476 = vld [vmem:[#allocation7 + $0x3c] sm:$0xf]
        %v477 = vld [vmem:[#allocation7 + $0x40] sm:$0xf]
        %v478 = vld [vmem:[#allocation7 + $0x44] sm:$0xf]
        %v479 = vld [vmem:[#allocation7 + $0x48] sm:$0xf]
        %v480 = vld [vmem:[#allocation7 + $0x4c] sm:$0xf]
        %v481 = vld [vmem:[#allocation7 + $0x50] sm:$0xf]
        %v482 = vld [vmem:[#allocation7 + $0x54] sm:$0xf]
        %v483 = vld [vmem:[#allocation7 + $0x58] sm:$0xf]
        %v484 = vld [vmem:[#allocation7 + $0x5c] sm:$0xf]
        %v485 = vld [vmem:[#allocation7 + $0x60] sm:$0xf]
        %v486 = vld [vmem:[#allocation7 + $0x64] sm:$0xf]
        %v487 = vld [vmem:[#allocation7 + $0x68] sm:$0xf]
        %v488 = vld [vmem:[#allocation7 + $0x6c] sm:$0xf]
        %v489 = vld [vmem:[#allocation7 + $0x70] sm:$0xf]
        %v490 = vld [vmem:[#allocation7 + $0x74] sm:$0xf]
        %v491 = vld [vmem:[#allocation7 + $0x78] sm:$0xf]
        %v492 = vld [vmem:[#allocation7 + $0x7c] sm:$0xf]
        %v493 = vld [vmem:[#allocation8] sm:$0xf]
        %v494 = vld [vmem:[#allocation8 + $0x4] sm:$0xf]
        %v495 = vld [vmem:[#allocation8 + $0x8] sm:$0xf]
        %v496 = vld [vmem:[#allocation8 + $0xc] sm:$0xf]
        %v497 = vld [vmem:[#allocation8 + $0x10] sm:$0xf]
        %v498 = vld [vmem:[#allocation8 + $0x14] sm:$0xf]
        %v499 = vld [vmem:[#allocation8 + $0x18] sm:$0xf]
        %v500 = vld [vmem:[#allocation8 + $0x1c] sm:$0xf]
        %v501 = vld [vmem:[#allocation8 + $0x20] sm:$0xf]
        %v502 = vld [vmem:[#allocation8 + $0x24] sm:$0xf]
        %v503 = vld [vmem:[#allocation8 + $0x28] sm:$0xf]
        %v504 = vld [vmem:[#allocation8 + $0x2c] sm:$0xf]
        %v505 = vld [vmem:[#allocation8 + $0x30] sm:$0xf]
        %v506 = vld [vmem:[#allocation8 + $0x34] sm:$0xf]
        %v507 = vld [vmem:[#allocation8 + $0x38] sm:$0xf]
        %v508 = vld [vmem:[#allocation8 + $0x3c] sm:$0xf]
        %v525 = vunpack.c.l.b16 %v493
        %v526 = vunpack.c.l.b16 %v494
        %v527 = vunpack.c.l.b16 %v495
        %v528 = vunpack.c.l.b16 %v496
        %v529 = vunpack.c.l.b16 %v497
        %v530 = vunpack.c.l.b16 %v498
        %v531 = vunpack.c.l.b16 %v499
        %v532 = vunpack.c.l.b16 %v500
        %v533 = vunpack.c.l.b16 %v501
        %v534 = vunpack.c.l.b16 %v502
        %v535 = vunpack.c.l.b16 %v503
        %v536 = vunpack.c.l.b16 %v504
        %v537 = vunpack.c.l.b16 %v505
        %v538 = vunpack.c.l.b16 %v506
        %v539 = vunpack.c.l.b16 %v507
        %v540 = vunpack.c.l.b16 %v508
        %v541 = vpack.c.b16 %v526, %v525
        %v542 = vpack.c.b16 %v528, %v527
        %v543 = vpack.c.b16 %v530, %v529
        %v544 = vpack.c.b16 %v532, %v531
        %v545 = vpack.c.b16 %v534, %v533
        %v546 = vpack.c.b16 %v536, %v535
        %v547 = vpack.c.b16 %v538, %v537
        %v548 = vpack.c.b16 %v540, %v539
        %557 = vmatprep.subr.bf16.mxu0 0
        %558 = vmatpush1.bf16.msra.mxu0 %v541
        %559 = vmatprep.subr.bf16.mxu0 0
        %560 = vmatpush1.bf16.msra.mxu0 %v542
        %561 = vmatprep.subr.bf16.mxu0 0
        %562 = vmatpush1.bf16.msra.mxu0 %v543
        %563 = vmatprep.subr.bf16.mxu0 0
        %564 = vmatpush1.bf16.msra.mxu0 %v544
        %565 = vmatprep.subr.bf16.mxu0 0
        %566 = vmatpush1.bf16.msra.mxu0 %v545
        %567 = vmatprep.subr.bf16.mxu0 0
        %568 = vmatpush1.bf16.msra.mxu0 %v546
        %569 = vmatprep.subr.bf16.mxu0 0
        %570 = vmatpush1.bf16.msra.mxu0 %v547
        %571 = vmatprep.subr.bf16.mxu0 0
        %572 = vmatpush1.bf16.msra.mxu0 %v548
        %573 = vmatprep.subr.bf16.mxu0 0
        %574 = vmatpush1.bf16.msra.mxu0 0
        %575 = vmatprep.subr.bf16.mxu0 0
        %576 = vmatpush1.bf16.msra.mxu0 0
        %577 = vmatprep.subr.bf16.mxu0 0
        %578 = vmatpush1.bf16.msra.mxu0 0
        %579 = vmatprep.subr.bf16.mxu0 0
        %580 = vmatpush1.bf16.msra.mxu0 0
        %581 = vmatprep.subr.bf16.mxu0 0
        %582 = vmatpush1.bf16.msra.mxu0 0
        %583 = vmatprep.subr.bf16.mxu0 0
        %584 = vmatpush1.bf16.msra.mxu0 0
        %585 = vmatprep.subr.bf16.mxu0 0
        %586 = vmatpush1.bf16.msra.mxu0 0
        %587 = vmatprep.subr.bf16.mxu0 0
        %588 = vmatpush1.bf16.msra.mxu0 0
        %589 = vmatprep.mubr.bf16.mxu0 0
        %590 = vmatmul.mubr.bf16.gmra.mrb[0].mxu0 %v445
        %v591 = vpop.f32.mrb[0].mxu0
        %v592 = vadd.f32 0.0, %v591
        %v593 = vpop.f32.mrb[0].mxu0
        %v594 = vpop.f32.mrb[0].mxu0
        %v595 = vadd.f32 0.0, %v594
        %v596 = vpop.f32.mrb[0].mxu0
        %597 = vmatprep.mubr.bf16.mxu0 0
        %598 = vmatmul.mubr.bf16.gmra.mrb[0].mxu0 %v446
        %v599 = vpop.f32.mrb[0].mxu0
        %v600 = vadd.f32 0.0, %v599
        %v601 = vpop.f32.mrb[0].mxu0
        %v602 = vpop.f32.mrb[0].mxu0
        %v603 = vadd.f32 0.0, %v602
        %v604 = vpop.f32.mrb[0].mxu0
        %605 = vmatprep.mubr.bf16.mxu0 0
        %606 = vmatmul.mubr.bf16.gmra.mrb[0].mxu0 %v447
        %v607 = vpop.f32.mrb[0].mxu0
        %v608 = vadd.f32 0.0, %v607
        %v609 = vpop.f32.mrb[0].mxu0
        %v610 = vpop.f32.mrb[0].mxu0
        %v611 = vadd.f32 0.0, %v610
        %v612 = vpop.f32.mrb[0].mxu0
        %613 = vmatprep.mubr.bf16.mxu0 0
        %614 = vmatmul.mubr.bf16.gmra.mrb[0].mxu0 %v448
        %v615 = vpop.f32.mrb[0].mxu0
        %v616 = vadd.f32 0.0, %v615
        %v617 = vpop.f32.mrb[0].mxu0
        %v618 = vpop.f32.mrb[0].mxu0
        %v619 = vadd.f32 0.0, %v618
        %v620 = vpop.f32.mrb[0].mxu0
        %621 = vmatprep.mubr.bf16.mxu0 0
        %622 = vmatmul.mubr.bf16.gmra.mrb[0].mxu0 %v449
        %v623 = vpop.f32.mrb[0].mxu0
        %v624 = vadd.f32 0.0, %v623
        %v625 = vpop.f32.mrb[0].mxu0
        %v626 = vpop.f32.mrb[0].mxu0
        %v627 = vadd.f32 0.0, %v626
        %v628 = vpop.f32.mrb[0].mxu0
        %629 = vmatprep.mubr.bf16.mxu0 0
        %630 = vmatmul.mubr.bf16.gmra.mrb[0].mxu0 %v450
        %v631 = vpop.f32.mrb[0].mxu0
        %v632 = vadd.f32 0.0, %v631
        %v633 = vpop.f32.mrb[0].mxu0
        %v634 = vpop.f32.mrb[0].mxu0
        %v635 = vadd.f32 0.0, %v634
        %v636 = vpop.f32.mrb[0].mxu0
        %637 = vmatprep.mubr.bf16.mxu0 0
        %638 = vmatmul.mubr.bf16.gmra.mrb[0].mxu0 %v451
        %v639 = vpop.f32.mrb[0].mxu0
        %v640 = vadd.f32 0.0, %v639
        %v641 = vpop.f32.mrb[0].mxu0
        %v642 = vpop.f32.mrb[0].mxu0
        %v643 = vadd.f32 0.0, %v642
        %v644 = vpop.f32.mrb[0].mxu0
        %645 = vmatprep.mubr.bf16.mxu0 0
        %646 = vmatmul.mubr.bf16.gmra.mrb[0].mxu0 %v452
        %v647 = vpop.f32.mrb[0].mxu0
        %v648 = vadd.f32 0.0, %v647
        %v649 = vpop.f32.mrb[0].mxu0
        %v650 = vpop.f32.mrb[0].mxu0
        %v651 = vadd.f32 0.0, %v650
        %v652 = vpop.f32.mrb[0].mxu0
        %653 = vmatprep.mubr.bf16.mxu0 0
        %654 = vmatmul.mubr.bf16.gmra.mrb[0].mxu0 %v453
        %v655 = vpop.f32.mrb[0].mxu0
        %v656 = vadd.f32 0.0, %v655
        %v657 = vpop.f32.mrb[0].mxu0
        %v658 = vpop.f32.mrb[0].mxu0
        %v659 = vadd.f32 0.0, %v658
        %v660 = vpop.f32.mrb[0].mxu0
        %661 = vmatprep.mubr.bf16.mxu0 0
        %662 = vmatmul.mubr.bf16.gmra.mrb[0].mxu0 %v454
        %v663 = vpop.f32.mrb[0].mxu0
        %v664 = vadd.f32 0.0, %v663
        %v665 = vpop.f32.mrb[0].mxu0
        %v666 = vpop.f32.mrb[0].mxu0
        %v667 = vadd.f32 0.0, %v666
        %v668 = vpop.f32.mrb[0].mxu0
        %669 = vmatprep.mubr.bf16.mxu0 0
        %670 = vmatmul.mubr.bf16.gmra.mrb[0].mxu0 %v455
        %v671 = vpop.f32.mrb[0].mxu0
        %v672 = vadd.f32 0.0, %v671
        %v673 = vpop.f32.mrb[0].mxu0
        %v674 = vpop.f32.mrb[0].mxu0
        %v675 = vadd.f32 0.0, %v674
        %v676 = vpop.f32.mrb[0].mxu0
        %677 = vmatprep.mubr.bf16.mxu0 0
        %678 = vmatmul.mubr.bf16.gmra.mrb[0].mxu0 %v456
        %v679 = vpop.f32.mrb[0].mxu0
        %v680 = vadd.f32 0.0, %v679
        %v681 = vpop.f32.mrb[0].mxu0
        %v682 = vpop.f32.mrb[0].mxu0
        %v683 = vadd.f32 0.0, %v682
        %v684 = vpop.f32.mrb[0].mxu0
        %685 = vmatprep.mubr.bf16.mxu0 0
        %686 = vmatmul.mubr.bf16.gmra.mrb[0].mxu0 %v457
        %v687 = vpop.f32.mrb[0].mxu0
        %v688 = vadd.f32 0.0, %v687
        %v689 = vpop.f32.mrb[0].mxu0
        %v690 = vpop.f32.mrb[0].mxu0
        %v691 = vadd.f32 0.0, %v690
        %v692 = vpop.f32.mrb[0].mxu0
        %693 = vmatprep.mubr.bf16.mxu0 0
        %694 = vmatmul.mubr.bf16.gmra.mrb[0].mxu0 %v458
        %v695 = vpop.f32.mrb[0].mxu0
        %v696 = vadd.f32 0.0, %v695
        %v697 = vpop.f32.mrb[0].mxu0
        %v698 = vpop.f32.mrb[0].mxu0
        %v699 = vadd.f32 0.0, %v698
        %v700 = vpop.f32.mrb[0].mxu0
        %701 = vmatprep.mubr.bf16.mxu0 0
        %702 = vmatmul.mubr.bf16.gmra.mrb[0].mxu0 %v459
        %v703 = vpop.f32.mrb[0].mxu0
        %v704 = vadd.f32 0.0, %v703
        %v705 = vpop.f32.mrb[0].mxu0
        %v706 = vpop.f32.mrb[0].mxu0
        %v707 = vadd.f32 0.0, %v706
        %v708 = vpop.f32.mrb[0].mxu0
        %709 = vmatprep.mubr.bf16.mxu0 0
        %710 = vmatmul.mubr.bf16.gmra.mrb[0].mxu0 %v460
        %v711 = vpop.f32.mrb[0].mxu0
        %v712 = vadd.f32 0.0, %v711
        %v713 = vpop.f32.mrb[0].mxu0
        %v714 = vpop.f32.mrb[0].mxu0
        %v715 = vadd.f32 0.0, %v714
        %v716 = vpop.f32.mrb[0].mxu0
        %717 = vdwg.mxu0
        %v750 = vunpack.c.l.b16 %v461
        %v751 = vunpack.c.l.b16 %v462
        %v752 = vunpack.c.l.b16 %v463
        %v753 = vunpack.c.l.b16 %v464
        %v754 = vunpack.c.l.b16 %v465
        %v755 = vunpack.c.l.b16 %v466
        %v756 = vunpack.c.l.b16 %v467
        %v757 = vunpack.c.l.b16 %v468
        %v758 = vunpack.c.l.b16 %v469
        %v759 = vunpack.c.l.b16 %v470
        %v760 = vunpack.c.l.b16 %v471
        %v761 = vunpack.c.l.b16 %v472
        %v762 = vunpack.c.l.b16 %v473
        %v763 = vunpack.c.l.b16 %v474
        %v764 = vunpack.c.l.b16 %v475
        %v765 = vunpack.c.l.b16 %v476
        %v766 = vunpack.c.l.b16 %v477
        %v767 = vunpack.c.l.b16 %v478
        %v768 = vunpack.c.l.b16 %v479
        %v769 = vunpack.c.l.b16 %v480
        %v770 = vunpack.c.l.b16 %v481
        %v771 = vunpack.c.l.b16 %v482
        %v772 = vunpack.c.l.b16 %v483
        %v773 = vunpack.c.l.b16 %v484
        %v774 = vunpack.c.l.b16 %v485
        %v775 = vunpack.c.l.b16 %v486
        %v776 = vunpack.c.l.b16 %v487
        %v777 = vunpack.c.l.b16 %v488
        %v778 = vunpack.c.l.b16 %v489
        %v779 = vunpack.c.l.b16 %v490
        %v780 = vunpack.c.l.b16 %v491
        %v781 = vunpack.c.l.b16 %v492
        %v782 = vpack.c.b16 %v751, %v750
        %v783 = vpack.c.b16 %v753, %v752
        %v784 = vpack.c.b16 %v755, %v754
        %v785 = vpack.c.b16 %v757, %v756
        %v786 = vpack.c.b16 %v759, %v758
        %v787 = vpack.c.b16 %v761, %v760
        %v788 = vpack.c.b16 %v763, %v762
        %v789 = vpack.c.b16 %v765, %v764
        %v790 = vpack.c.b16 %v767, %v766
        %v791 = vpack.c.b16 %v769, %v768
        %v792 = vpack.c.b16 %v771, %v770
        %v793 = vpack.c.b16 %v773, %v772
        %v794 = vpack.c.b16 %v775, %v774
        %v795 = vpack.c.b16 %v777, %v776
        %v796 = vpack.c.b16 %v779, %v778
        %v797 = vpack.c.b16 %v781, %v780
        %814 = vmatprep.subr.bf16.mxu0 0
        %815 = vmatpush1.bf16.msra.mxu0 %v782
        %816 = vmatprep.subr.bf16.mxu0 0
        %817 = vmatpush1.bf16.msra.mxu0 %v783
        %818 = vmatprep.subr.bf16.mxu0 0
        %819 = vmatpush1.bf16.msra.mxu0 %v784
        %820 = vmatprep.subr.bf16.mxu0 0
        %821 = vmatpush1.bf16.msra.mxu0 %v785
        %822 = vmatprep.subr.bf16.mxu0 0
        %823 = vmatpush1.bf16.msra.mxu0 %v786
        %824 = vmatprep.subr.bf16.mxu0 0
        %825 = vmatpush1.bf16.msra.mxu0 %v787
        %826 = vmatprep.subr.bf16.mxu0 0
        %827 = vmatpush1.bf16.msra.mxu0 %v788
        %828 = vmatprep.subr.bf16.mxu0 0
        %829 = vmatpush1.bf16.msra.mxu0 %v789
        %830 = vmatprep.subr.bf16.mxu0 0
        %831 = vmatpush1.bf16.msra.mxu0 %v790
        %832 = vmatprep.subr.bf16.mxu0 0
        %833 = vmatpush1.bf16.msra.mxu0 %v791
        %834 = vmatprep.subr.bf16.mxu0 0
        %835 = vmatpush1.bf16.msra.mxu0 %v792
        %836 = vmatprep.subr.bf16.mxu0 0
        %837 = vmatpush1.bf16.msra.mxu0 %v793
        %838 = vmatprep.subr.bf16.mxu0 0
        %839 = vmatpush1.bf16.msra.mxu0 %v794
        %840 = vmatprep.subr.bf16.mxu0 0
        %841 = vmatpush1.bf16.msra.mxu0 %v795
        %842 = vmatprep.subr.bf16.mxu0 0
        %843 = vmatpush1.bf16.msra.mxu0 %v796
        %844 = vmatprep.subr.bf16.mxu0 0
        %845 = vmatpush1.bf16.msra.mxu0 %v797
        %846 = vmatprep.mubr.bf16.mxu0 %v382
        %847 = vmatmul.mubr.bf16.gmra.mrb[0].mxu0 %v381
        %v848 = vpop.f32.mrb[0].mxu0
        %v849 = vadd.f32 %v592, %v848
        %v850 = vpop.f32.mrb[0].mxu0
        %v851 = vpop.f32.mrb[0].mxu0
        %v852 = vadd.f32 %v595, %v851
        %v853 = vpop.f32.mrb[0].mxu0
        %854 = vmatprep.mubr.bf16.mxu0 %v384
        %855 = vmatmul.mubr.bf16.gmra.mrb[0].mxu0 %v383
        %v856 = vpop.f32.mrb[0].mxu0
        %v857 = vadd.f32 %v600, %v856
        %v858 = vpop.f32.mrb[0].mxu0
        %v859 = vpop.f32.mrb[0].mxu0
        %v860 = vadd.f32 %v603, %v859
        %v861 = vpop.f32.mrb[0].mxu0
        %862 = vmatprep.mubr.bf16.mxu0 %v386
        %863 = vmatmul.mubr.bf16.gmra.mrb[0].mxu0 %v385
        %v864 = vpop.f32.mrb[0].mxu0
        %v865 = vadd.f32 %v608, %v864
        %v866 = vpop.f32.mrb[0].mxu0
        %v867 = vpop.f32.mrb[0].mxu0
        %v868 = vadd.f32 %v611, %v867
        %v869 = vpop.f32.mrb[0].mxu0
        %870 = vmatprep.mubr.bf16.mxu0 %v388
        %871 = vmatmul.mubr.bf16.gmra.mrb[0].mxu0 %v387
        %v872 = vpop.f32.mrb[0].mxu0
        %v873 = vadd.f32 %v616, %v872
        %v874 = vpop.f32.mrb[0].mxu0
        %v875 = vpop.f32.mrb[0].mxu0
        %v876 = vadd.f32 %v619, %v875
        %v877 = vpop.f32.mrb[0].mxu0
        %878 = vmatprep.mubr.bf16.mxu0 %v390
        %879 = vmatmul.mubr.bf16.gmra.mrb[0].mxu0 %v389
        %v880 = vpop.f32.mrb[0].mxu0
        %v881 = vadd.f32 %v624, %v880
        %v882 = vpop.f32.mrb[0].mxu0
        %v883 = vpop.f32.mrb[0].mxu0
        %v884 = vadd.f32 %v627, %v883
        %v885 = vpop.f32.mrb[0].mxu0
        %886 = vmatprep.mubr.bf16.mxu0 %v392
        %887 = vmatmul.mubr.bf16.gmra.mrb[0].mxu0 %v391
        %v888 = vpop.f32.mrb[0].mxu0
        %v889 = vadd.f32 %v632, %v888
        %v890 = vpop.f32.mrb[0].mxu0
        %v891 = vpop.f32.mrb[0].mxu0
        %v892 = vadd.f32 %v635, %v891
        %v893 = vpop.f32.mrb[0].mxu0
        %894 = vmatprep.mubr.bf16.mxu0 %v394
        %895 = vmatmul.mubr.bf16.gmra.mrb[0].mxu0 %v393
        %v896 = vpop.f32.mrb[0].mxu0
        %v897 = vadd.f32 %v640, %v896
        %v898 = vpop.f32.mrb[0].mxu0
        %v899 = vpop.f32.mrb[0].mxu0
        %v900 = vadd.f32 %v643, %v899
        %v901 = vpop.f32.mrb[0].mxu0
        %902 = vmatprep.mubr.bf16.mxu0 %v396
        %903 = vmatmul.mubr.bf16.gmra.mrb[0].mxu0 %v395
        %v904 = vpop.f32.mrb[0].mxu0
        %v905 = vadd.f32 %v648, %v904
        %v906 = vpop.f32.mrb[0].mxu0
        %v907 = vpop.f32.mrb[0].mxu0
        %v908 = vadd.f32 %v651, %v907
        %v909 = vpop.f32.mrb[0].mxu0
        %910 = vmatprep.mubr.bf16.mxu0 %v398
        %911 = vmatmul.mubr.bf16.gmra.mrb[0].mxu0 %v397
        %v912 = vpop.f32.mrb[0].mxu0
        %v913 = vadd.f32 %v656, %v912
        %v914 = vpop.f32.mrb[0].mxu0
        %v915 = vpop.f32.mrb[0].mxu0
        %v916 = vadd.f32 %v659, %v915
        %v917 = vpop.f32.mrb[0].mxu0
        %918 = vmatprep.mubr.bf16.mxu0 %v400
        %919 = vmatmul.mubr.bf16.gmra.mrb[0].mxu0 %v399
        %v920 = vpop.f32.mrb[0].mxu0
        %v921 = vadd.f32 %v664, %v920
        %v922 = vpop.f32.mrb[0].mxu0
        %v923 = vpop.f32.mrb[0].mxu0
        %v924 = vadd.f32 %v667, %v923
        %v925 = vpop.f32.mrb[0].mxu0
        %926 = vmatprep.mubr.bf16.mxu0 %v402
        %927 = vmatmul.mubr.bf16.gmra.mrb[0].mxu0 %v401
        %v928 = vpop.f32.mrb[0].mxu0
        %v929 = vadd.f32 %v672, %v928
        %v930 = vpop.f32.mrb[0].mxu0
        %v931 = vpop.f32.mrb[0].mxu0
        %v932 = vadd.f32 %v675, %v931
        %v933 = vpop.f32.mrb[0].mxu0
        %934 = vmatprep.mubr.bf16.mxu0 %v404
        %935 = vmatmul.mubr.bf16.gmra.mrb[0].mxu0 %v403
        %v936 = vpop.f32.mrb[0].mxu0
        %v937 = vadd.f32 %v680, %v936
        %v938 = vpop.f32.mrb[0].mxu0
        %v939 = vpop.f32.mrb[0].mxu0
        %v940 = vadd.f32 %v683, %v939
        %v941 = vpop.f32.mrb[0].mxu0
        %942 = vmatprep.mubr.bf16.mxu0 %v406
        %943 = vmatmul.mubr.bf16.gmra.mrb[0].mxu0 %v405
        %v944 = vpop.f32.mrb[0].mxu0
        %v945 = vadd.f32 %v688, %v944
        %v946 = vpop.f32.mrb[0].mxu0
        %v947 = vpop.f32.mrb[0].mxu0
        %v948 = vadd.f32 %v691, %v947
        %v949 = vpop.f32.mrb[0].mxu0
        %950 = vmatprep.mubr.bf16.mxu0 %v408
        %951 = vmatmul.mubr.bf16.gmra.mrb[0].mxu0 %v407
        %v952 = vpop.f32.mrb[0].mxu0
        %v953 = vadd.f32 %v696, %v952
        %v954 = vpop.f32.mrb[0].mxu0
        %v955 = vpop.f32.mrb[0].mxu0
        %v956 = vadd.f32 %v699, %v955
        %v957 = vpop.f32.mrb[0].mxu0
        %958 = vmatprep.mubr.bf16.mxu0 %v410
        %959 = vmatmul.mubr.bf16.gmra.mrb[0].mxu0 %v409
        %v960 = vpop.f32.mrb[0].mxu0
        %v961 = vadd.f32 %v704, %v960
        %v962 = vpop.f32.mrb[0].mxu0
        %v963 = vpop.f32.mrb[0].mxu0
        %v964 = vadd.f32 %v707, %v963
        %v965 = vpop.f32.mrb[0].mxu0
        %966 = vmatprep.mubr.bf16.mxu0 %v412
        %967 = vmatmul.mubr.bf16.gmra.mrb[0].mxu0 %v411
        %v968 = vpop.f32.mrb[0].mxu0
        %v969 = vadd.f32 %v712, %v968
        %v970 = vpop.f32.mrb[0].mxu0
        %v971 = vpop.f32.mrb[0].mxu0
        %v972 = vadd.f32 %v715, %v971
        %v973 = vpop.f32.mrb[0].mxu0
        %974 = vdwg.mxu0
        %v975 = vld [vmem:[%s4] sm:$0x1]
        %v977 = vlaneseq
        %v978 = vshrl.u32 %v977, 7
        %v979 = vsub.s32 0, %v978
        %v980 = vrot.slane %v975, %v979
        %v982 = vadd.f32 %v849, %v980
        %v983 = vadd.f32 %v852, %v980
        %v984 = vadd.f32 %v857, %v980
        %v985 = vadd.f32 %v860, %v980
        %v986 = vadd.f32 %v865, %v980
        %v987 = vadd.f32 %v868, %v980
        %v988 = vadd.f32 %v873, %v980
        %v989 = vadd.f32 %v876, %v980
        %v990 = vadd.f32 %v881, %v980
        %v991 = vadd.f32 %v884, %v980
        %v992 = vadd.f32 %v889, %v980
        %v993 = vadd.f32 %v892, %v980
        %v994 = vadd.f32 %v897, %v980
        %v995 = vadd.f32 %v900, %v980
        %v996 = vadd.f32 %v905, %v980
        %v997 = vadd.f32 %v908, %v980
        %v998 = vadd.f32 %v913, %v980
        %v999 = vadd.f32 %v916, %v980
        %v1000 = vadd.f32 %v921, %v980
        %v1001 = vadd.f32 %v924, %v980
        %v1002 = vadd.f32 %v929, %v980
        %v1003 = vadd.f32 %v932, %v980
        %v1004 = vadd.f32 %v937, %v980
        %v1005 = vadd.f32 %v940, %v980
        %v1006 = vadd.f32 %v945, %v980
        %v1007 = vadd.f32 %v948, %v980
        %v1008 = vadd.f32 %v953, %v980
        %v1009 = vadd.f32 %v956, %v980
        %v1010 = vadd.f32 %v961, %v980
        %v1011 = vadd.f32 %v964, %v980
        %v1012 = vadd.f32 %v969, %v980
        %v1013 = vadd.f32 %v972, %v980
        %v1014 = vpack.c.bf16 %v983, %v982
        %v1015 = vpack.c.bf16 %v985, %v984
        %v1016 = vpack.c.bf16 %v987, %v986
        %v1017 = vpack.c.bf16 %v989, %v988
        %v1018 = vpack.c.bf16 %v991, %v990
        %v1019 = vpack.c.bf16 %v993, %v992
        %v1020 = vpack.c.bf16 %v995, %v994
        %v1021 = vpack.c.bf16 %v997, %v996
        %v1022 = vpack.c.bf16 %v999, %v998
        %v1023 = vpack.c.bf16 %v1001, %v1000
        %v1024 = vpack.c.bf16 %v1003, %v1002
        %v1025 = vpack.c.bf16 %v1005, %v1004
        %v1026 = vpack.c.bf16 %v1007, %v1006
        %v1027 = vpack.c.bf16 %v1009, %v1008
        %v1028 = vpack.c.bf16 %v1011, %v1010
        %v1029 = vpack.c.bf16 %v1013, %v1012
        %v1046 = vunpack.c.l.b16 %v1014
        %v1047 = vunpack.c.h.b16 %v1014
        %v1048 = vunpack.c.l.b16 %v1015
        %v1049 = vunpack.c.h.b16 %v1015
        %v1050 = vunpack.c.l.b16 %v1016
        %v1051 = vunpack.c.h.b16 %v1016
        %v1052 = vunpack.c.l.b16 %v1017
        %v1053 = vunpack.c.h.b16 %v1017
        %v1054 = vunpack.c.l.b16 %v1018
        %v1055 = vunpack.c.h.b16 %v1018
        %v1056 = vunpack.c.l.b16 %v1019
        %v1057 = vunpack.c.h.b16 %v1019
        %v1058 = vunpack.c.l.b16 %v1020
        %v1059 = vunpack.c.h.b16 %v1020
        %v1060 = vunpack.c.l.b16 %v1021
        %v1061 = vunpack.c.h.b16 %v1021
        %v1062 = vunpack.c.l.b16 %v1022
        %v1063 = vunpack.c.h.b16 %v1022
        %v1064 = vunpack.c.l.b16 %v1023
        %v1065 = vunpack.c.h.b16 %v1023
        %v1066 = vunpack.c.l.b16 %v1024
        %v1067 = vunpack.c.h.b16 %v1024
        %v1068 = vunpack.c.l.b16 %v1025
        %v1069 = vunpack.c.h.b16 %v1025
        %v1070 = vunpack.c.l.b16 %v1026
        %v1071 = vunpack.c.h.b16 %v1026
        %v1072 = vunpack.c.l.b16 %v1027
        %v1073 = vunpack.c.h.b16 %v1027
        %v1074 = vunpack.c.l.b16 %v1028
        %v1075 = vunpack.c.h.b16 %v1028
        %v1076 = vunpack.c.l.b16 %v1029
        %v1077 = vunpack.c.h.b16 %v1029
        %v1078 = vpack.c.b16 %v1046, %v1046
        %v1079 = vpack.c.b16 %v1047, %v1047
        %v1080 = vpack.c.b16 %v1048, %v1048
        %v1081 = vpack.c.b16 %v1049, %v1049
        %v1082 = vpack.c.b16 %v1050, %v1050
        %v1083 = vpack.c.b16 %v1051, %v1051
        %v1084 = vpack.c.b16 %v1052, %v1052
        %v1085 = vpack.c.b16 %v1053, %v1053
        %v1086 = vpack.c.b16 %v1054, %v1054
        %v1087 = vpack.c.b16 %v1055, %v1055
        %v1088 = vpack.c.b16 %v1056, %v1056
        %v1089 = vpack.c.b16 %v1057, %v1057
        %v1090 = vpack.c.b16 %v1058, %v1058
        %v1091 = vpack.c.b16 %v1059, %v1059
        %v1092 = vpack.c.b16 %v1060, %v1060
        %v1093 = vpack.c.b16 %v1061, %v1061
        %v1094 = vpack.c.b16 %v1062, %v1062
        %v1095 = vpack.c.b16 %v1063, %v1063
        %v1096 = vpack.c.b16 %v1064, %v1064
        %v1097 = vpack.c.b16 %v1065, %v1065
        %v1098 = vpack.c.b16 %v1066, %v1066
        %v1099 = vpack.c.b16 %v1067, %v1067
        %v1100 = vpack.c.b16 %v1068, %v1068
        %v1101 = vpack.c.b16 %v1069, %v1069
        %v1102 = vpack.c.b16 %v1070, %v1070
        %v1103 = vpack.c.b16 %v1071, %v1071
        %v1104 = vpack.c.b16 %v1072, %v1072
        %v1105 = vpack.c.b16 %v1073, %v1073
        %v1106 = vpack.c.b16 %v1074, %v1074
        %v1107 = vpack.c.b16 %v1075, %v1075
        %v1108 = vpack.c.b16 %v1076, %v1076
        %v1109 = vpack.c.b16 %v1077, %v1077
        %1142 = vst [vmem:[%s312] sm:$0xf] %v1078
        %1143 = vst [vmem:[%s312 + $0x4] sm:$0xf] %v1079
        %1144 = vst [vmem:[%s312 + $0x8] sm:$0xf] %v1080
        %1145 = vst [vmem:[%s312 + $0xc] sm:$0xf] %v1081
        %1146 = vst [vmem:[%s312 + $0x10] sm:$0xf] %v1082
        %1147 = vst [vmem:[%s312 + $0x14] sm:$0xf] %v1083
        %1148 = vst [vmem:[%s312 + $0x18] sm:$0xf] %v1084
        %1149 = vst [vmem:[%s312 + $0x1c] sm:$0xf] %v1085
        %1150 = vst [vmem:[%s312 + $0x20] sm:$0xf] %v1086
        %1151 = vst [vmem:[%s312 + $0x24] sm:$0xf] %v1087
        %1152 = vst [vmem:[%s312 + $0x28] sm:$0xf] %v1088
        %1153 = vst [vmem:[%s312 + $0x2c] sm:$0xf] %v1089
        %1154 = vst [vmem:[%s312 + $0x30] sm:$0xf] %v1090
        %1155 = vst [vmem:[%s312 + $0x34] sm:$0xf] %v1091
        %1156 = vst [vmem:[%s312 + $0x38] sm:$0xf] %v1092
        %1157 = vst [vmem:[%s312 + $0x3c] sm:$0xf] %v1093
        %1158 = vst [vmem:[%s312 + $0x40] sm:$0xf] %v1094
        %1159 = vst [vmem:[%s312 + $0x44] sm:$0xf] %v1095
        %1160 = vst [vmem:[%s312 + $0x48] sm:$0xf] %v1096
        %1161 = vst [vmem:[%s312 + $0x4c] sm:$0xf] %v1097
        %1162 = vst [vmem:[%s312 + $0x50] sm:$0xf] %v1098
        %1163 = vst [vmem:[%s312 + $0x54] sm:$0xf] %v1099
        %1164 = vst [vmem:[%s312 + $0x58] sm:$0xf] %v1100
        %1165 = vst [vmem:[%s312 + $0x5c] sm:$0xf] %v1101
        %1166 = vst [vmem:[%s312 + $0x60] sm:$0xf] %v1102
        %1167 = vst [vmem:[%s312 + $0x64] sm:$0xf] %v1103
        %1168 = vst [vmem:[%s312 + $0x68] sm:$0xf] %v1104
        %1169 = vst [vmem:[%s312 + $0x6c] sm:$0xf] %v1105
        %1170 = vst [vmem:[%s312 + $0x70] sm:$0xf] %v1106
        %1171 = vst [vmem:[%s312 + $0x74] sm:$0xf] %v1107
        %1172 = vst [vmem:[%s312 + $0x78] sm:$0xf] %v1108
        %1173 = vst [vmem:[%s312 + $0x7c] sm:$0xf] %v1109
        %s1174 = sand.u32 %s149, 1
        %s1175 = scalar_lea.sflag [#allocation4], %s1174
        %s1176 = sand.u32 %s149, 1
        %s1177 = smul.addr %s1176, 128
        %s1178 = scalar_lea.vmem [#allocation10], %s1177
        // Predicated region
        $region57: #{cbow_forward.1} parent=39 // pred_check
          %p1179 = pneg %p159
        $region58: #{cbow_forward.1} parent=39 // pred_check_branch
          %1181 = sbr.rel (%p1179) target = $region60
        $region59: #{cbow_forward.1} parent=39 // pred_region
          %s1182 = smul.u32 32, %s26
          %s1184 = ssub.s32 2048, 2048
          %1185 = vsyncadd %s1175, %s1184
          %s1186 = smul.addr %s1182, 64
          %s1187 = scalar_lea.hbm %s5, %s1186
          %s1188 = sshll.u32 %s1178, 4
          %s1189 = int_to_ptr.vmem [resolvable:$true] %s1188
          %1194 = dma.vmem_to_hbm [thread:$0]  %s1189, 2048, %s1187, %s1175, 64, 64, 4
        $region60: #{cbow_forward.1} parent=39 // pred_fallthru
          _
      $region40: #{cbow_forward.1} parent=5 // pred_fallthru
        _
      %p1195 = scmp.le.s32.totalorder 2, %s21
      // Predicated region
      $region61: #{cbow_forward.1} parent=5 // pred_check
        %p1196 = pneg %p1195
      $region62: #{cbow_forward.1} parent=5 // pred_check_branch
        %1198 = sbr.rel (%p1196) target = $region64
      $region63: #{cbow_forward.1} parent=5 // pred_region
        %s1199 = ssub.s32 %s21, 2
        // Predicated region
        $region65: #{cbow_forward.1} parent=63 // pred_check
          %p1200 = pneg %p165
        $region66: #{cbow_forward.1} parent=63 // pred_check_branch
          %1202 = sbr.rel (%p1200) target = $region68
        $region67: #{cbow_forward.1} parent=63 // pred_region
          %s1203 = sand.u32 %s150, 1
          %s1204 = scalar_lea.sflag [#allocation4], %s1203
          %s1205 = sand.u32 %s150, 1
          %s1206 = smul.addr %s1205, 128
          %s1207 = scalar_lea.vmem [#allocation10], %s1206
          %1208 = dma.done %s1204, 2048
        $region68: #{cbow_forward.1} parent=63 // pred_fallthru
          _
      $region64: #{cbow_forward.1} parent=5 // pred_fallthru
        _
    $region6: #{cbow_forward.1} parent=1 // loop_footer
      %s25 = sadd.s32 1, %s21
    $region7: #{cbow_forward.1} parent=1 // loop_footer_branch
      %20 = sbr.rel target = $region3
    $region8: #{cbow_forward.1} parent=1 // loop_exit
      _
    %1209 = vsyncpa [#allocation3], 1
    %s1210 = scalar_lea.sflag [#allocation3], 1
    %1211 = vsyncpa %s1210, 1
    %1212 = vsyncpa [#allocation6], 1
    %s1213 = scalar_lea.sflag [#allocation6], 1
    %1214 = vsyncpa %s1213, 1
    %1215 = vsyncpa [#allocation9], 1
    %1216 = vsyncpa [#allocation4], 1
    %s1217 = scalar_lea.sflag [#allocation4], 1
    %1218 = vsyncpa %s1217, 1

</llo_original>
